<compile_context>
chip_gen: v5e
topology: v5e:2x2
jax: 0.10.0
libtpu: 0.0.40
codegen_flags: <defaults>
</compile_context>

<pallas_src>
import numpy as np
import jax
import jax.numpy as jnp
from jax import lax
from jax.experimental import pallas as pl
from jax.experimental.pallas import tpu as pltpu


def _pick_tile(dim, pref, align):
    """Largest tile <= `pref` that divides `dim` and is a multiple of `align`
    (so it satisfies the TPU (8,128) block-shape rule).  Falls back to the
    full dimension (always a legal block) when no aligned divisor exists."""
    if dim <= pref:
        return dim
    t = (pref // align) * align
    while t >= align:
        if dim % t == 0:
            return t
        t -= align
    # TODO(synk): boundary masking for huge dims with no aligned divisor; the
    # full-extent fallback stays correct but costs VMEM.
    return dim


def _clamp_vmem(est_bytes):
    """Explicit scoped-VMEM request: the real footprint plus margin, floored at
    32 MiB (v5e scoped default is only 16 MiB) and capped at 96 MiB.  On v7x
    (64 MiB physical) shrink tk_kv rather than raising this."""
    return int(min(96 * 2**20, max(est_bytes + (4 << 20), 32 * 2**20)))


# ----------------------------------------------------------------------------
# Tiled linear kernel: y = x @ w_t + b   (w_t pre-transposed: (K, N))
# Used for the wide Q/K/V projections and for fc_o.
# ----------------------------------------------------------------------------
def _linear_kernel(x_ref, w_ref, b_ref, o_ref, acc_ref):
    @pl.when(pl.program_id(2) == 0)
    def _():
        acc_ref[...] = jnp.zeros_like(acc_ref)

    acc_ref[...] += jnp.dot(x_ref[...], w_ref[...],
                            preferred_element_type=jnp.float32)

    @pl.when(pl.program_id(2) == pl.num_programs(2) - 1)
    def _():
        o_ref[...] = (acc_ref[...] + b_ref[...]).astype(o_ref.dtype)


def linear(x, w_t, b_row, *, tm=256, tn=256, tk=512, out_dtype=jnp.float32):
    m, k_dim = x.shape
    k2, n = w_t.shape
    assert k2 == k_dim
    tm = _pick_tile(m, tm, 8)       # sublane dim of x / out blocks
    tn = _pick_tile(n, tn, 128)     # lane dim of w / bias / out blocks
    tk = _pick_tile(k_dim, tk, 128)  # lane dim of x block, sublane of w block
    grid = (m // tm, n // tn, k_dim // tk)

    out_bytes = jnp.dtype(out_dtype).itemsize
    cost = pl.CostEstimate(
        flops=2 * m * n * k_dim,
        transcendentals=0,
        bytes_accessed=int(m * k_dim * x.dtype.itemsize
                           + k_dim * n * w_t.dtype.itemsize
                           + n * 4
                           + m * n * out_bytes),
    )
    block_bytes = 2 * (tm * tk * x.dtype.itemsize
                       + tk * tn * w_t.dtype.itemsize
                       + tn * b_row.dtype.itemsize
                       + tm * tn * out_bytes)
    scratch_bytes = tm * tn * 4
    vmem_limit = _clamp_vmem(block_bytes + scratch_bytes + tm * tn * 8)

    return pl.pallas_call(
        _linear_kernel,
        out_shape=jax.ShapeDtypeStruct((m, n), out_dtype),
        grid_spec=pltpu.PrefetchScalarGridSpec(
            num_scalar_prefetch=0,
            grid=grid,
            in_specs=[
                pl.BlockSpec((tm, tk), lambda i, j, kk: (i, kk)),
                pl.BlockSpec((tk, tn), lambda i, j, kk: (kk, j)),
                pl.BlockSpec((1, tn), lambda i, j, kk: (0, j)),
            ],
            out_specs=pl.BlockSpec((tm, tn), lambda i, j, kk: (i, j)),
            scratch_shapes=[pltpu.VMEM((tm, tn), jnp.float32)],
        ),
        compiler_params=pltpu.CompilerParams(
            dimension_semantics=("parallel", "parallel", "arbitrary"),
            vmem_limit_bytes=vmem_limit),
        cost_estimate=cost,
    )(x, w_t, b_row)


# ----------------------------------------------------------------------------
# Attention kernel over PRE-PROJECTED, head-major inputs.
#   grid = (n_head, n_k // tk); per K/V tile: scores, exact softmax over the
#   *query* axis (columns are independent -> no online pass needed when only
#   the K axis is tiled), attn writeback, attn@V accumulated in f32 VMEM.
# ----------------------------------------------------------------------------
def _mha_attention_kernel(qh_ref, kh_ref, vh_ref, attn_ref, out_ref, acc_ref):
    j = pl.program_id(1)

    @pl.when(j == 0)
    def _():
        acc_ref[...] = jnp.zeros_like(acc_ref)

    # Scores (n_q, tk): contract on d_k without materializing k.T.
    # (The 1/sqrt(d_k) scale is folded into the Q projection weights.)
    u = lax.dot_general(qh_ref[0], kh_ref[0], (((1,), (1,)), ((), ())),
                        preferred_element_type=jnp.float32)

    # Softmax over the *query* axis (nn.Softmax(dim=1) on (n_head, n_q, n_k)).
    m = jnp.max(u, axis=0, keepdims=True)
    e = jnp.exp(u - m)
    inv = 1.0 / jnp.sum(e, axis=0, keepdims=True)   # exact denominator (parity)
    attn = e * inv

    attn_ref[0] = attn.astype(attn_ref.dtype)
    acc_ref[...] += jnp.dot(attn.astype(jnp.bfloat16), vh_ref[0],
                            preferred_element_type=jnp.float32)

    @pl.when(j == pl.num_programs(1) - 1)
    def _():
        out_ref[0] = acc_ref[...].astype(out_ref.dtype)


def fused_head_attention(qp3, kp3, vp3, *, tk_kv=256,
                         attn_dtype=jnp.bfloat16, out_dtype=jnp.bfloat16):
    """qp3/kp3/vp3: head-major projected tensors (H, n, d), bf16."""
    n_head, n_q, d_k = qp3.shape
    hk, n_k, dk2 = kp3.shape
    hv, n_v, d_v = vp3.shape
    assert hk == n_head and hv == n_head and dk2 == d_k
    assert n_v == n_k, "attn @ v requires n_v == n_k"

    # tk is the sublane dim of the K/V blocks AND the lane dim of the attn
    # output block -> must be a multiple of 128 (or the full n_k).
    tk = _pick_tile(n_k, tk_kv, 128)
    grid = (n_head, n_k // tk)

    attn_bytes = jnp.dtype(attn_dtype).itemsize
    out_bytes = jnp.dtype(out_dtype).itemsize
    cost = pl.CostEstimate(
        flops=2 * n_head * n_q * n_k * (d_k + d_v),
        transcendentals=n_head * n_q * n_k,
        bytes_accessed=int((qp3.size + kp3.size + vp3.size) * 2
                           + n_head * n_q * n_k * attn_bytes
                           + n_head * n_q * d_v * out_bytes),
    )
    block_bytes = 2 * (n_q * d_k * 2 + tk * d_k * 2 + tk * d_v * 2
                       + n_q * tk * attn_bytes + n_q * d_v * out_bytes)
    transient_bytes = 4 * n_q * tk * 4 + n_q * d_v * 4   # u/e/attn f32 temps + acc
    vmem_limit = _clamp_vmem(block_bytes + transient_bytes)

    attn, out = pl.pallas_call(
        _mha_attention_kernel,
        out_shape=(
            jax.ShapeDtypeStruct((n_head, n_q, n_k), attn_dtype),
            jax.ShapeDtypeStruct((n_head, n_q, d_v), out_dtype),
        ),
        grid_spec=pltpu.PrefetchScalarGridSpec(
            num_scalar_prefetch=0,
            grid=grid,
            in_specs=[
                # TODO(synk): the head-resident Q block and its constant index
                # could be single-buffered (pipeline_mode=pl.Buffered(1)) to
                # save VMEM once that path is exercised in CI.
                pl.BlockSpec((1, n_q, d_k), lambda h, j: (h, 0, 0)),  # Q_h
                pl.BlockSpec((1, tk, d_k), lambda h, j: (h, j, 0)),   # K_h tile
                pl.BlockSpec((1, tk, d_v), lambda h, j: (h, j, 0)),   # V_h tile
            ],
            out_specs=(
                pl.BlockSpec((1, n_q, tk), lambda h, j: (h, 0, j)),   # attn
                pl.BlockSpec((1, n_q, d_v), lambda h, j: (h, 0, 0)),  # attn@V
            ),
            scratch_shapes=[pltpu.VMEM((n_q, d_v), jnp.float32)],
        ),
        compiler_params=pltpu.CompilerParams(
            # head axis parallel (feeds both v7x TensorCores); the K/V-tile
            # axis carries the attn@V accumulation -> arbitrary.
            dimension_semantics=("parallel", "arbitrary"),
            vmem_limit_bytes=vmem_limit),
        cost_estimate=cost,
    )(qp3, kp3, vp3)
    return attn, out


# ----------------------------------------------------------------------------
# MultiHeadAttention wrapper (parameter setup + glue reshapes in plain JAX).
# ----------------------------------------------------------------------------
class MultiHeadAttentionPallas:
    def __init__(self, n_head, d_k_, d_v_, d_k, d_v, d_o, key,
                 attn_dtype=jnp.bfloat16):
        self.n_head, self.d_k, self.d_v = n_head, d_k, d_v
        self.attn_dtype = attn_dtype
        self.scale = float(np.power(d_k, 0.5))

        def init_linear(kk, d_in, d_out):
            kw, kb = jax.random.split(kk)
            bound = 1.0 / np.sqrt(d_in)
            w = jax.random.uniform(kw, (d_out, d_in), jnp.float32, -bound, bound)
            b = jax.random.uniform(kb, (d_out,), jnp.float32, -bound, bound)
            return w, b

        k1, k2, k3, k4 = jax.random.split(key, 4)
        self.w_q, self.b_q = init_linear(k1, d_k_, n_head * d_k)
        self.w_k, self.b_k = init_linear(k2, d_k_, n_head * d_k)
        self.w_v, self.b_v = init_linear(k3, d_v_, n_head * d_v)
        self.w_o, self.b_o = init_linear(k4, n_head * d_v, d_o)

        # Kernel-side constants: pre-transposed wide weights (bf16 for the MXU),
        # f32 bias rows (added post-accumulation), 1/sqrt(d_k) folded into Q.
        inv_scale = 1.0 / self.scale
        self.wq_t = (self.w_q.T * inv_scale).astype(jnp.bfloat16)     # (d_k_, H*d_k)
        self.bq_row = (self.b_q * inv_scale).reshape(1, -1).astype(jnp.float32)
        self.wk_t = self.w_k.T.astype(jnp.bfloat16)
        self.bk_row = self.b_k.reshape(1, -1).astype(jnp.float32)
        self.wv_t = self.w_v.T.astype(jnp.bfloat16)
        self.bv_row = self.b_v.reshape(1, -1).astype(jnp.float32)
        self.w_oT = self.w_o.T.astype(jnp.bfloat16)
        self.b_o_row = self.b_o.reshape(1, -1).astype(jnp.float32)

    def forward(self, q, k, v, mask=None):
        if mask is not None:
            # TODO(synk): optional boolean mask (masked_fill with -inf before
            # the softmax) is not implemented in the kernel.
            raise NotImplementedError("mask is not supported by the Pallas MHA kernel")

        n_q = q.shape[0]
        n_k = k.shape[0]
        n_v = v.shape[0]
        assert n_v == n_k, "attn @ v requires n_v == n_k"

        qb = q.astype(jnp.bfloat16)
        kb = k.astype(jnp.bfloat16)
        vb = v.astype(jnp.bfloat16)

        # Wide projections (raw inputs read once, MXU width = n_head*d_head).
        qp = linear(qb, self.wq_t, self.bq_row, out_dtype=jnp.bfloat16)
        kp = linear(kb, self.wk_t, self.bk_row, out_dtype=jnp.bfloat16)
        vp = linear(vb, self.wv_t, self.bv_row, out_dtype=jnp.bfloat16)

        # Head-major layout (H, n, d); cheap XLA transpose of the small
        # projected tensors (<< attn-matrix traffic).
        qp3 = qp.reshape(n_q, self.n_head, self.d_k).transpose(1, 0, 2)
        kp3 = kp.reshape(n_k, self.n_head, self.d_k).transpose(1, 0, 2)
        vp3 = vp.reshape(n_v, self.n_head, self.d_v).transpose(1, 0, 2)

        attn, out_hqd = fused_head_attention(qp3, kp3, vp3,
                                             attn_dtype=self.attn_dtype)

        # Reproduce the exact PyTorch reshape:
        #   output.view(n_head, n_q, d_v).permute(0,1,2).contiguous().view(n_q, -1)
        # i.e. a plain row-major view of (n_head, n_q, d_v) as (n_q, n_head*d_v).
        out_flat = out_hqd.reshape(n_q, self.n_head * self.d_v)
        out = linear(out_flat, self.w_oT, self.b_o_row)
        return attn, out

    # Pure-JAX reference mirroring the PyTorch math (and the kernel's bf16
    # operand casts / folded scale) for verification.
    def forward_ref(self, q, k, v):
        n_q = q.shape[0]
        qb = q.astype(jnp.bfloat16)
        kb = k.astype(jnp.bfloat16)
        vb = v.astype(jnp.bfloat16)
        qp = (jnp.dot(qb, self.wq_t, preferred_element_type=jnp.float32)
              + self.bq_row).astype(jnp.bfloat16)
        kp = (jnp.dot(kb, self.wk_t, preferred_element_type=jnp.float32)
              + self.bk_row).astype(jnp.bfloat16)
        vp = (jnp.dot(vb, self.wv_t, preferred_element_type=jnp.float32)
              + self.bv_row).astype(jnp.bfloat16)
        qh = qp.reshape(n_q, self.n_head, self.d_k).transpose(1, 0, 2)
        kh = kp.reshape(-1, self.n_head, self.d_k).transpose(1, 0, 2)
        vh = vp.reshape(-1, self.n_head, self.d_v).transpose(1, 0, 2)
        u = jnp.einsum("hqd,hkd->hqk", qh, kh,
                       preferred_element_type=jnp.float32)
        attn = jax.nn.softmax(u, axis=1)  # dim=1 == query axis (as in reference)
        out = jnp.einsum("hqk,hkd->hqd", attn.astype(jnp.bfloat16), vh,
                         preferred_element_type=jnp.float32).astype(jnp.bfloat16)
        out = out.reshape(n_q, self.n_head * self.d_v)
        out = (jnp.dot(out, self.w_oT, preferred_element_type=jnp.float32)
               + self.b_o_row)
        return attn, out


if __name__ == "__main__":
    # Small deterministic example.
    n_head, d_k_, d_v_, d_k, d_v, d_o = 2, 16, 16, 8, 8, 16
    n_q = n_k = n_v = 8

    root = jax.random.PRNGKey(0)
    kq, kk_, kv_, kparams = jax.random.split(root, 4)
    q = jax.random.normal(kq, (n_q, d_k_), jnp.float32)
    k = jax.random.normal(kk_, (n_k, d_k_), jnp.float32)
    v = jax.random.normal(kv_, (n_v, d_v_), jnp.float32)

    mha = MultiHeadAttentionPallas(n_head, d_k_, d_v_, d_k, d_v, d_o, kparams)

    attn, out = mha.forward(q, k, v)
    attn = jax.block_until_ready(attn)
    out = jax.block_until_ready(out)

    attn_ref, out_ref = mha.forward_ref(q, k, v)
    # bf16 MXU operands / bf16 attn storage -> loosened tolerances.
    assert np.allclose(np.asarray(attn, dtype=np.float32),
                       np.asarray(attn_ref, dtype=np.float32),
                       atol=2e-2, rtol=2e-2)
    assert np.allclose(np.asarray(out, dtype=np.float32),
                       np.asarray(out_ref, dtype=np.float32),
                       atol=2e-2, rtol=2e-2)

    print("KERNEL_OK")
</pallas_src>

<mosaic_0001>
module attributes {stable_mosaic.version = 11 : i64} {
  func.func @_linear_kernel(%arg0: i32, %arg1: i32, %arg2: i32, %arg3: memref<8x16xbf16, #tpu.memory_space<vmem>>, %arg4: memref<16x16xbf16, #tpu.memory_space<vmem>>, %arg5: memref<1x16xf32, #tpu.memory_space<vmem>>, %arg6: memref<8x16xbf16, #tpu.memory_space<vmem>>, %arg7: memref<8x16xf32, #tpu.memory_space<vmem>>) attributes {dimension_semantics = [#tpu.dimension_semantics<parallel>, #tpu.dimension_semantics<parallel>, #tpu.dimension_semantics<arbitrary>], iteration_bounds = array<i64: 1, 1, 1>, scalar_prefetch = 0 : i64, scratch_operands = 1 : i64, tpu.core_type = #tpu.core_type<tc>, window_params = [{transform_indices = @transform_0, window_bounds = array<i64: 8, 16>}, {transform_indices = @transform_1, window_bounds = array<i64: 16, 16>}, {transform_indices = @transform_2, window_bounds = array<i64: 1, 16>}, {transform_indices = @transform_3, window_bounds = array<i64: 8, 16>}]} {
    %c0_i32 = arith.constant 0 : i32
    %0 = arith.cmpi eq, %arg2, %c0_i32 : i32
    %1 = arith.extui %0 : i1 to i32
    %c0_i32_0 = arith.constant 0 : i32
    %2 = arith.cmpi ne, %1, %c0_i32_0 : i32
    scf.if %2 {
      %cst_10 = arith.constant 0.000000e+00 : f32
      %12 = vector.broadcast %cst_10 : f32 to vector<8x16xf32>
      %c0_11 = arith.constant 0 : index
      %c0_12 = arith.constant 0 : index
      %13 = vector.load %arg7[%c0_11, %c0_12] : memref<8x16xf32, #tpu.memory_space<vmem>>, vector<8x16xf32>
      tpu.vector_store %arg7[%c0_11, %c0_12], %12 {strides = array<i32>} : memref<8x16xf32, #tpu.memory_space<vmem>>, vector<8x16xf32>,
    } else {
    }
    %c0 = arith.constant 0 : index
    %c0_1 = arith.constant 0 : index
    %3 = vector.load %arg7[%c0, %c0_1] : memref<8x16xf32, #tpu.memory_space<vmem>>, vector<8x16xf32>
    %c0_2 = arith.constant 0 : index
    %c0_3 = arith.constant 0 : index
    %4 = vector.load %arg3[%c0_2, %c0_3] : memref<8x16xbf16, #tpu.memory_space<vmem>>, vector<8x16xbf16>
    %c0_4 = arith.constant 0 : index
    %c0_5 = arith.constant 0 : index
    %5 = vector.load %arg4[%c0_4, %c0_5] : memref<16x16xbf16, #tpu.memory_space<vmem>>, vector<16x16xbf16>
    %cst = arith.constant dense<0.000000e+00> : vector<8x16xf32>
    %6 = tpu.matmul %4, %5, %cst {dimension_numbers = #tpu.dot_dimension_numbers<[1], [0], [0], [1], [0, 0, 1, 1], [], []>} : vector<8x16xbf16>, vector<16x16xbf16>, vector<8x16xf32> -> vector<8x16xf32>
    %7 = arith.addf %3, %6 : vector<8x16xf32>
    %c0_6 = arith.constant 0 : index
    %c0_7 = arith.constant 0 : index
    %8 = vector.load %arg7[%c0_6, %c0_7] : memref<8x16xf32, #tpu.memory_space<vmem>>, vector<8x16xf32>
    tpu.vector_store %arg7[%c0_6, %c0_7], %7 {strides = array<i32>} : memref<8x16xf32, #tpu.memory_space<vmem>>, vector<8x16xf32>,
    %c0_i32_8 = arith.constant 0 : i32
    %9 = arith.cmpi eq, %arg2, %c0_i32_8 : i32
    %10 = arith.extui %9 : i1 to i32
    %c0_i32_9 = arith.constant 0 : i32
    %11 = arith.cmpi ne, %10, %c0_i32_9 : i32
    scf.if %11 {
      %c0_10 = arith.constant 0 : index
      %c0_11 = arith.constant 0 : index
      %12 = vector.load %arg7[%c0_10, %c0_11] : memref<8x16xf32, #tpu.memory_space<vmem>>, vector<8x16xf32>
      %c0_12 = arith.constant 0 : index
      %c0_13 = arith.constant 0 : index
      %13 = vector.load %arg5[%c0_12, %c0_13] : memref<1x16xf32, #tpu.memory_space<vmem>>, vector<1x16xf32>
      %14 = vector.broadcast %13 : vector<1x16xf32> to vector<8x16xf32>
      %15 = arith.addf %12, %14 : vector<8x16xf32>
      %16 = arith.truncf %15 : vector<8x16xf32> to vector<8x16xbf16>
      %c0_14 = arith.constant 0 : index
      %c0_15 = arith.constant 0 : index
      %17 = vector.load %arg6[%c0_14, %c0_15] : memref<8x16xbf16, #tpu.memory_space<vmem>>, vector<8x16xbf16>
      tpu.vector_store %arg6[%c0_14, %c0_15], %16 {strides = array<i32>} : memref<8x16xbf16, #tpu.memory_space<vmem>>, vector<8x16xbf16>,
    } else {
    }
    return
  }
  func.func @transform_0(%arg0: i32, %arg1: i32, %arg2: i32) -> (i32, i32) {
    %c0_i32 = arith.constant 0 : i32
    return %arg0, %arg2 : i32, i32
  }
  func.func @transform_1(%arg0: i32, %arg1: i32, %arg2: i32) -> (i32, i32) {
    %c0_i32 = arith.constant 0 : i32
    return %arg2, %arg1 : i32, i32
  }
  func.func @transform_2(%arg0: i32, %arg1: i32, %arg2: i32) -> (i32, i32) {
    %c0_i32 = arith.constant 0 : i32
    %c0_i32_0 = arith.constant 0 : i32
    return %c0_i32, %arg1 : i32, i32
  }
  func.func @transform_3(%arg0: i32, %arg1: i32, %arg2: i32) -> (i32, i32) {
    %c0_i32 = arith.constant 0 : i32
    return %arg0, %arg1 : i32, i32
  }
}

</mosaic_0001>

<llo_original>
// kernel: tpu_custom_call.1
$region0: #{tpu_custom_call.1}
  #allocation0 [shape = 'u32[]', space=smem, size = 0x4, offset = 0x4, fixed_abs, tag = 'smem constant byte address 0x4 - core index']
  #allocation1 [shape = 'u32[72,128]{1,0:T(1,128)}', space=vmem, size = 0x9000, scoped, tag = 'internal scratch']
  #allocation2 [shape = 'f32[8,16]{1,0:T(8,128)}', space=vmem, size = 0x1000, scoped, tag = 'scratch operand']
  %s0 = inlined_call_operand.hbm [shape: bf16[8,16], index: 0, kind: input, shape index: {}]
  %s1 = inlined_call_operand.hbm [shape: bf16[16,16], index: 1, kind: input, shape index: {}]
  %s2 = inlined_call_operand.vmem [shape: f32[1,16], index: 2, kind: input, shape index: {}]
  %s3 = inlined_call_operand.hbm [shape: bf16[8,16], index: 3, kind: output, shape index: {}]
  %s4 = sld [smem:[#allocation0]]
  $region38: #{tpu_custom_call.1} parent=0
    _
  %s6 = ssub.s32 1, %s4
  %s7 = scalar_select 0, %s6, %s4
  $region1: #{tpu_custom_call.1} parent=0
    #allocation3 [shape = 'u8[2048]{0}', space=vmem, size = 0x800, scoped, tag = 'input window, operand 0, single buffered']
    #allocation4 [shape = 's32[1]{0}', space=sflag, size = 0x4, scoped, tag = 'scoped memory for tpu_custom_call.1']
    #allocation5 [shape = 's32[1]{0}', space=sflag, size = 0x4, scoped, tag = 'scoped memory for tpu_custom_call.1']
    #allocation6 [shape = 'u8[4096]{0}', space=vmem, size = 0x1000, scoped, tag = 'input window, operand 1, single buffered']
    #allocation7 [shape = 's32[1]{0}', space=sflag, size = 0x4, scoped, tag = 'scoped memory for tpu_custom_call.1']
    #allocation8 [shape = 'u8[2048]{0}', space=vmem, size = 0x800, scoped, tag = 'output window, operand 0, single buffered']
    %8 = vsyncpa [#allocation4], 0
    %9 = vsyncpa [#allocation7], 0
    %10 = vsyncpa [#allocation5], 0
    // Predicated region
    $region2: #{tpu_custom_call.1} parent=1 // pred_check
      _
    $region3: #{tpu_custom_call.1} parent=1 // pred_check_branch
      %12 = sbr.rel (0) target = $region5
    $region4: #{tpu_custom_call.1} parent=1 // pred_region
      %14 = vsyncadd [#allocation4], 0
      %s16 = sshll.u32 %s0, 4
      %s17 = int_to_ptr.hbm [resolvable:$true] %s16
      %s18 = sshll.u32 [#allocation3], 4
      %s19 = int_to_ptr.vmem [resolvable:$true] %s18
      %21 = dma.hbm_to_vmem [thread:$0]  %s17, 64, %s19, [#allocation4]
    $region5: #{tpu_custom_call.1} parent=1 // pred_fallthru
      _
    // Predicated region
    $region6: #{tpu_custom_call.1} parent=1 // pred_check
      _
    $region7: #{tpu_custom_call.1} parent=1 // pred_check_branch
      %23 = sbr.rel (0) target = $region9
    $region8: #{tpu_custom_call.1} parent=1 // pred_region
      %25 = vsyncadd [#allocation7], 0
      %s26 = sshll.u32 %s1, 4
      %s27 = int_to_ptr.hbm [resolvable:$true] %s26
      %s28 = sshll.u32 [#allocation6], 4
      %s29 = int_to_ptr.vmem [resolvable:$true] %s28
      %34 = dma.hbm_to_vmem [thread:$0]  %s27, 128, %s29, [#allocation7], 64, 64, 4
    $region9: #{tpu_custom_call.1} parent=1 // pred_fallthru
      _
    // Predicated region
    $region10: #{tpu_custom_call.1} parent=1 // pred_check
      _
    $region11: #{tpu_custom_call.1} parent=1 // pred_check_branch
      %36 = sbr.rel (0) target = $region13
    $region12: #{tpu_custom_call.1} parent=1 // pred_region
      _
    $region13: #{tpu_custom_call.1} parent=1 // pred_fallthru
      _
    // Predicated region
    $region14: #{tpu_custom_call.1} parent=1 // pred_check
      _
    $region15: #{tpu_custom_call.1} parent=1 // pred_check_branch
      %38 = sbr.rel (0) target = $region17
    $region16: #{tpu_custom_call.1} parent=1 // pred_region
      %40 = dma.done [#allocation4], 64
    $region17: #{tpu_custom_call.1} parent=1 // pred_fallthru
      _
    // Predicated region
    $region18: #{tpu_custom_call.1} parent=1 // pred_check
      _
    $region19: #{tpu_custom_call.1} parent=1 // pred_check_branch
      %42 = sbr.rel (0) target = $region21
    $region20: #{tpu_custom_call.1} parent=1 // pred_region
      %44 = dma.done [#allocation7], 128
    $region21: #{tpu_custom_call.1} parent=1 // pred_fallthru
      _
    %p46 = scmp.eq.s32.totalorder 0, 0
    // Predicated region
    $region22: #{tpu_custom_call.1} parent=1 // pred_check
      %p47 = pneg %p46
    $region23: #{tpu_custom_call.1} parent=1 // pred_check_branch
      %49 = sbr.rel (%p47) target = $region25
    $region24: #{tpu_custom_call.1} parent=1 // pred_region
      %vm50 = vcmask 130048
      %51 = vst.msk [vmem:[#allocation2] sm:$0xff] %vm50, 0.0
    $region25: #{tpu_custom_call.1} parent=1 // pred_fallthru
      _
    %v52 = vld [vmem:[#allocation2] sm:$0xff]
    %v53 = vld [vmem:[#allocation3] sm:$0xf]
    %v54 = vld [vmem:[#allocation6] sm:$0xf]
    %v55 = vld [vmem:[#allocation6 + $0x4] sm:$0xf]
    %v58 = vunpack.c.l.b16 %v54
    %v59 = vunpack.c.l.b16 %v55
    %v60 = vpack.c.b16 %v59, %v58
    %vm62 = vcmask 130048
    %v64 = vsel %vm62, %v53, 0
    %66 = vmatpush.bf16.msra.mxu0 0
    %67 = vmatpush.bf16.msra.mxu0 0
    %68 = vmatpush.bf16.msra.mxu0 0
    %69 = vmatpush.bf16.msra.mxu0 0
    %70 = vmatpush.bf16.msra.mxu0 0
    %71 = vmatpush.bf16.msra.mxu0 0
    %72 = vmatpush.bf16.msra.mxu0 0
    %73 = vmatpush.bf16.msra.mxu0 %v60
    %74 = vmatmul.bf16.gmra.mxu0 %v64
    %v75 = vpop.f32.mrf.mxu0
    %v76 = vadd.f32 0.0, %v75
    %v77 = vpop.f32.mrf.mxu0
    %78 = vdwg.mxu0
    %v79 = vadd.f32 %v52, %v76
    %80 = vst.msk [vmem:[#allocation2] sm:$0xff] %vm62, %v79
    // Predicated region
    $region26: #{tpu_custom_call.1} parent=1 // pred_check
      %p81 = pneg %p46
    $region27: #{tpu_custom_call.1} parent=1 // pred_check_branch
      %83 = sbr.rel (%p81) target = $region29
    $region28: #{tpu_custom_call.1} parent=1 // pred_region
      %v84 = vld [vmem:[#allocation2] sm:$0xff]
      %v85 = vld [vmem:[%s2] sm:$0x1]
      %v87 = vperm.slane %v85, 0
      %v89 = vadd.f32 %v84, %v87
      %v90 = vpack.c.bf16 %v89, %v89
      %vm91 = vcmask 125952
      %92 = vst.msk [vmem:[#allocation8] sm:$0xf] %vm91, %v90
    $region29: #{tpu_custom_call.1} parent=1 // pred_fallthru
      _
    // Predicated region
    $region30: #{tpu_custom_call.1} parent=1 // pred_check
      _
    $region31: #{tpu_custom_call.1} parent=1 // pred_check_branch
      %94 = sbr.rel (0) target = $region33
    $region32: #{tpu_custom_call.1} parent=1 // pred_region
      %96 = vsyncadd [#allocation5], 0
      %s98 = sshll.u32 [#allocation8], 4
      %s99 = int_to_ptr.vmem [resolvable:$true] %s98
      %s100 = sshll.u32 %s3, 4
      %s101 = int_to_ptr.hbm [resolvable:$true] %s100
      %103 = dma.vmem_to_hbm [thread:$0]  %s99, 64, %s101, [#allocation5]
    $region33: #{tpu_custom_call.1} parent=1 // pred_fallthru
      _
    // Predicated region
    $region34: #{tpu_custom_call.1} parent=1 // pred_check
      _
    $region35: #{tpu_custom_call.1} parent=1 // pred_check_branch
      %105 = sbr.rel (0) target = $region37
    $region36: #{tpu_custom_call.1} parent=1 // pred_region
      %107 = dma.done [#allocation5], 64
    $region37: #{tpu_custom_call.1} parent=1 // pred_fallthru
      _
    %108 = vsyncpa [#allocation4], 1
    %109 = vsyncpa [#allocation7], 1
    %110 = vsyncpa [#allocation5], 1

</llo_original>
